<compile_context>
chip_gen: v7x
topology: tpu7x:2x2x1
jax: 0.10.0
libtpu: 0.0.40
codegen_flags: <defaults>
</compile_context>

<pallas_src>
import functools

import jax
import jax.numpy as jnp
from jax.experimental import pallas as pl
from jax.experimental.pallas import tpu as pltpu

# ---- static padded geometry (lane/sublane dense, biases folded in) ---------
S_PAD = 8            # padded input width; column 7 is the "ones" column for b1
H_PAD = 128          # padded hidden width (lane width); lane 127 is "ones" for b2
A_OUT = 8            # padded output width (== full output last dim -> legal block)
LANES = 128          # slab lane width

W1_OFF = 0                    # slab rows [0, 8)   : [w1 ; b1-row]  (S_PAD, 128)
W2_OFF = W1_OFF + S_PAD       # slab rows [8, 136) : [w2 ; b2-row]  (H_PAD, 128)
SLAB_ROWS = W2_OFF + H_PAD    # 136 (8-row aligned sections)
BIAS1_ROW = S_PAD - 1         # x ones-column index / b1 row inside the w1 block
BIAS2_ROW = H_PAD - 1         # hidden ones-lane index / b2 row inside the w2 block


def _round_up(n, m):
    return (n + m - 1) // m * m


def _net_kernel(x_ref, p_ref, o_ref):
    # x: (TB, 8) with column 7 == 1.0 for real rows; p: (136, 128); o: (TB, 8) fp32.
    x = x_ref[...]
    w1 = p_ref[W1_OFF:W1_OFF + S_PAD, :]      # (8, 128); row 7 = b1, [7,127] = 1.0
    w2 = p_ref[W2_OFF:W2_OFF + H_PAD, :]      # (128, 128); row 127 = b2

    # fc1 (+ b1 via ones column) -> ReLU.  fp32 accumulation on the MXU.
    h = jnp.dot(x, w1, preferred_element_type=jnp.float32)       # (TB, 128)
    h = jnp.maximum(h, 0.0).astype(w2.dtype)                      # h[:, 127] == 1.0
    # out (+ b2 via hidden ones lane).
    out = jnp.dot(h, w2, preferred_element_type=jnp.float32)      # (TB, 128)
    o_ref[...] = out[:, :A_OUT].astype(o_ref.dtype)


def pack_params(w1, b1, w2, b2, dtype=jnp.bfloat16):
    """Pack fc1/out weights+biases into one (136, 128) slab (call once per update).

    w1: (n_states, n_hidden)  = fc1.weight.T
    b1: (n_hidden,)           = fc1.bias
    w2: (n_hidden, n_actions) = out.weight.T
    b2: (n_actions,)          = out.bias
    """
    S, H = w1.shape
    H2, A = w2.shape
    assert H2 == H, "fc1/out hidden size mismatch"
    assert S <= BIAS1_ROW, f"n_states must be <= {BIAS1_ROW}"
    assert H <= BIAS2_ROW, f"n_hidden must be <= {BIAS2_ROW}"
    assert A <= A_OUT, f"n_actions must be <= {A_OUT}"

    slab = jnp.zeros((SLAB_ROWS, LANES), jnp.float32)
    slab = slab.at[W1_OFF:W1_OFF + S, :H].set(jnp.asarray(w1, jnp.float32))
    slab = slab.at[W1_OFF + BIAS1_ROW, :H].set(jnp.reshape(b1, (-1,)).astype(jnp.float32))
    slab = slab.at[W1_OFF + BIAS1_ROW, BIAS2_ROW].set(1.0)   # makes h[:,127] == 1 after ReLU
    slab = slab.at[W2_OFF:W2_OFF + H, :A].set(jnp.asarray(w2, jnp.float32))
    slab = slab.at[W2_OFF + BIAS2_ROW, :A].set(jnp.reshape(b2, (-1,)).astype(jnp.float32))
    return slab.astype(dtype)


def _choose_tile(B, batch_tile):
    """Pick (TB, B_pad): big tiles to amortize step overhead, but keep >= 2 grid
    steps whenever the batch allows, so v7x's two TensorCores both get work."""
    B8 = _round_up(max(B, 1), 8)
    if B8 <= 16:
        return B8, B8                       # single tiny tile
    TB = min(batch_tile, _round_up((B8 + 1) // 2, 8))
    B_pad = _round_up(B8, TB)
    return TB, B_pad


@functools.partial(jax.jit, static_argnames=("n_actions", "batch_tile"))
def net_apply(slab, x, *, n_actions, batch_tile=512):
    """Forward pass given a pre-packed slab.  x: (B, n_states) -> (B, n_actions) fp32."""
    B, S = x.shape
    cdtype = slab.dtype
    TB, B_pad = _choose_tile(B, batch_tile)
    n_tiles = B_pad // TB

    # Pad activations; column 7 is the ones column (only for real rows, so padded
    # batch rows stay all-zero and produce zeros that are sliced off below).
    x_pad = jnp.zeros((B_pad, S_PAD), cdtype)
    x_pad = x_pad.at[:B, :S].set(x.astype(cdtype))
    x_pad = x_pad.at[:B, BIAS1_ROW].set(jnp.asarray(1.0, cdtype))

    out_pad = pl.pallas_call(
        _net_kernel,
        out_shape=jax.ShapeDtypeStruct((B_pad, A_OUT), jnp.float32),
        grid=(n_tiles,),
        in_specs=[
            pl.BlockSpec((TB, S_PAD), lambda i: (i, 0)),           # activations
            pl.BlockSpec((SLAB_ROWS, LANES), lambda i: (0, 0)),    # one param slab
        ],
        out_specs=pl.BlockSpec((TB, A_OUT), lambda i: (i, 0)),
        compiler_params=pltpu.CompilerParams(
            dimension_semantics=("parallel",),    # batch tiles -> v7x megacore
        ),
    )(x_pad, slab)

    return out_pad[:B, :n_actions]


def net_forward(x, w1, b1, w2, b2, *, compute_dtype=jnp.bfloat16, batch_tile=512):
    """Convenience one-shot wrapper (packs the slab every call).

    For DQN training/inference loops, call pack_params once per weight update and
    reuse net_apply(slab, x, ...) instead.
    """
    slab = pack_params(w1, b1, w2, b2, dtype=compute_dtype)
    return net_apply(slab, x, n_actions=w2.shape[1], batch_tile=batch_tile)


if __name__ == "__main__":
    # CartPole-v0: n_states=4, n_actions=2; module uses n_hidden=50.
    n_states, n_actions, n_hidden = 4, 2, 50
    batch = 2

    key = jax.random.PRNGKey(0)
    kx, kxl, k1, k2, k3, k4 = jax.random.split(key, 6)
    x_small = jax.random.normal(kx, (batch, n_states), jnp.float32)
    x_large = jax.random.normal(kxl, (300, n_states), jnp.float32)  # multi-tile path

    # PyTorch-style init: weights ~ N(0, 0.1), biases ~ U(-1/sqrt(fan_in), ...).
    w1 = 0.1 * jax.random.normal(k1, (n_states, n_hidden), jnp.float32)   # fc1.weight.T
    b1 = (1.0 / jnp.sqrt(n_states)) * (
        2.0 * jax.random.uniform(k2, (n_hidden,), jnp.float32) - 1.0)
    w2 = 0.1 * jax.random.normal(k3, (n_hidden, n_actions), jnp.float32)  # out.weight.T
    b2 = (1.0 / jnp.sqrt(n_hidden)) * (
        2.0 * jax.random.uniform(k4, (n_actions,), jnp.float32) - 1.0)

    def ref_fn(xx):
        return jnp.maximum(xx @ w1 + b1, 0.0) @ w2 + b2

    # --- fp32 path (exact vs reference) --------------------------------------
    slab_f32 = pack_params(w1, b1, w2, b2, dtype=jnp.float32)
    out_f32 = net_apply(slab_f32, x_small, n_actions=n_actions)
    jax.block_until_ready(out_f32)
    assert out_f32.shape == (batch, n_actions)
    assert jnp.allclose(out_f32, ref_fn(x_small), atol=1e-5, rtol=1e-5)

    # --- default bf16 path (fp32 accumulation; weight rounding only) ----------
    slab_bf16 = pack_params(w1, b1, w2, b2, dtype=jnp.bfloat16)
    out_small = net_apply(slab_bf16, x_small, n_actions=n_actions)
    out_large = net_apply(slab_bf16, x_large, n_actions=n_actions)
    jax.block_until_ready((out_small, out_large))
    assert out_small.shape == (batch, n_actions)
    assert out_large.shape == (300, n_actions)
    assert jnp.allclose(out_small, ref_fn(x_small), atol=5e-2, rtol=5e-2)
    assert jnp.allclose(out_large, ref_fn(x_large), atol=5e-2, rtol=5e-2)

    print("KERNEL_OK")
</pallas_src>

<mosaic_0001>
module attributes {stable_mosaic.version = 11 : i64} {
  func.func @_net_kernel(%arg0: i32, %arg1: memref<8x8xf32, #tpu.memory_space<vmem>>, %arg2: memref<136x128xf32, #tpu.memory_space<vmem>>, %arg3: memref<8x8xf32, #tpu.memory_space<vmem>>) attributes {dimension_semantics = [#tpu.dimension_semantics<parallel>], iteration_bounds = array<i64: 1>, scalar_prefetch = 0 : i64, scratch_operands = 0 : i64, tpu.core_type = #tpu.core_type<tc>, window_params = [{transform_indices = @transform_0, window_bounds = array<i64: 8, 8>}, {pipeline_mode = #tpu.pipeline_mode<synchronous>, transform_indices = @transform_1, window_bounds = array<i64: 136, 128>}, {transform_indices = @transform_2, window_bounds = array<i64: 8, 8>}]} {
    %c0 = arith.constant 0 : index
    %c0_0 = arith.constant 0 : index
    %0 = vector.load %arg1[%c0, %c0_0] : memref<8x8xf32, #tpu.memory_space<vmem>>, vector<8x8xf32>
    %c0_1 = arith.constant 0 : index
    %c0_2 = arith.constant 0 : index
    %1 = vector.load %arg2[%c0_1, %c0_2] : memref<136x128xf32, #tpu.memory_space<vmem>>, vector<8x128xf32>
    %c8 = arith.constant 8 : index
    %c0_3 = arith.constant 0 : index
    %2 = vector.load %arg2[%c8, %c0_3] : memref<136x128xf32, #tpu.memory_space<vmem>>, vector<128x128xf32>
    %cst = arith.constant dense<0.000000e+00> : vector<8x128xf32>
    %3 = tpu.matmul %0, %1, %cst {dimension_numbers = #tpu.dot_dimension_numbers<[1], [0], [0], [1], [0, 0, 1, 1], [], []>} : vector<8x8xf32>, vector<8x128xf32>, vector<8x128xf32> -> vector<8x128xf32>
    %cst_4 = arith.constant 0.000000e+00 : f32
    %4 = vector.broadcast %cst_4 : f32 to vector<8x128xf32>
    %5 = arith.maximumf %3, %4 : vector<8x128xf32>
    %cst_5 = arith.constant dense<0.000000e+00> : vector<8x128xf32>
    %6 = tpu.matmul %5, %2, %cst_5 {dimension_numbers = #tpu.dot_dimension_numbers<[1], [0], [0], [1], [0, 0, 1, 1], [], []>} : vector<8x128xf32>, vector<128x128xf32>, vector<8x128xf32> -> vector<8x128xf32>
    %7 = vector.extract_strided_slice %6 {offsets = [0, 0], sizes = [8, 8], strides = [1, 1]} : vector<8x128xf32> to vector<8x8xf32>
    %c0_6 = arith.constant 0 : index
    %c0_7 = arith.constant 0 : index
    %8 = vector.load %arg3[%c0_6, %c0_7] : memref<8x8xf32, #tpu.memory_space<vmem>>, vector<8x8xf32>
    tpu.vector_store %arg3[%c0_6, %c0_7], %7 {strides = array<i32>} : memref<8x8xf32, #tpu.memory_space<vmem>>, vector<8x8xf32>,
    return
  }
  func.func @transform_0(%arg0: i32) -> (i32, i32) {
    %c0_i32 = arith.constant 0 : i32
    %c0_i32_0 = arith.constant 0 : i32
    return %arg0, %c0_i32 : i32, i32
  }
  func.func @transform_1(%arg0: i32) -> (i32, i32) {
    %c0_i32 = arith.constant 0 : i32
    %c0_i32_0 = arith.constant 0 : i32
    %c0_i32_1 = arith.constant 0 : i32
    return %c0_i32, %c0_i32_0 : i32, i32
  }
  func.func @transform_2(%arg0: i32) -> (i32, i32) {
    %c0_i32 = arith.constant 0 : i32
    %c0_i32_0 = arith.constant 0 : i32
    return %arg0, %c0_i32 : i32, i32
  }
}

</mosaic_0001>

<llo_original>
// kernel: net_apply.1
$region0: #{net_apply.1}
  #allocation0 [shape = 'u32[]', space=smem, size = 0x4, offset = 0x4, fixed_abs, tag = 'smem constant byte address 0x4 - core index']
  #allocation1 [shape = 'u32[144,128]{1,0:T(1,128)}', space=vmem, size = 0x12000, scoped, tag = 'internal scratch']
  %s0 = inlined_call_operand.vmem [shape: f32[8,8], index: 0, kind: input, shape index: {}]
  %s1 = inlined_call_operand.hbm [shape: f32[136,128], index: 1, kind: input, shape index: {}]
  %s2 = inlined_call_operand.vmem [shape: f32[8,8], index: 2, kind: output, shape index: {}]
  %s3 = sld [smem:[#allocation0]]
  $region22: #{net_apply.1} parent=0
    _
  %s5 = ssub.s32 1, %s3
  %s6 = scalar_select 0, %s5, %s3
  $region1: #{net_apply.1} parent=0
    #allocation2 [shape = 'u8[69632]{0}', space=vmem, size = 0x11000, scoped, tag = 'input window, operand 1, single buffered']
    #allocation3 [shape = 's32[1]{0}', space=sflag, size = 0x4, scoped, tag = 'scoped memory for net_apply.1']
    %7 = vsyncpa [#allocation3], 0
    // Predicated region
    $region2: #{net_apply.1} parent=1 // pred_check
      _
    $region3: #{net_apply.1} parent=1 // pred_check_branch
      %9 = sbr.rel (0) target = $region5
    $region4: #{net_apply.1} parent=1 // pred_region
      _
    $region5: #{net_apply.1} parent=1 // pred_fallthru
      _
    // Predicated region
    $region6: #{net_apply.1} parent=1 // pred_check
      _
    $region7: #{net_apply.1} parent=1 // pred_check_branch
      %11 = sbr.rel (0) target = $region9
    $region8: #{net_apply.1} parent=1 // pred_region
      %s13 = ssub.s32 2176, 2176
      %14 = vsyncadd [#allocation3], %s13
      %s15 = sshll.u32 [#allocation2], 4
      %s16 = int_to_ptr.vmem [resolvable:$true] %s15
      %21 = dma.hbm_to_vmem [thread:$0]  %s1, 2176, %s16, [#allocation3], 128, 128, 8
    $region9: #{net_apply.1} parent=1 // pred_fallthru
      _
    // Predicated region
    $region10: #{net_apply.1} parent=1 // pred_check
      _
    $region11: #{net_apply.1} parent=1 // pred_check_branch
      %23 = sbr.rel (0) target = $region13
    $region12: #{net_apply.1} parent=1 // pred_region
      %24 = dma.done [#allocation3], 2176
    $region13: #{net_apply.1} parent=1 // pred_fallthru
      _
    %v25 = vld [vmem:[%s0] sm:$0xff]
    %v26 = vld [vmem:[#allocation2] sm:$0xff]
    %v27 = vld [vmem:[#allocation2 + $0x8] sm:$0xff]
    %v28 = vld [vmem:[#allocation2 + $0x10] sm:$0xff]
    %v29 = vld [vmem:[#allocation2 + $0x18] sm:$0xff]
    %v30 = vld [vmem:[#allocation2 + $0x20] sm:$0xff]
    %v31 = vld [vmem:[#allocation2 + $0x28] sm:$0xff]
    %v32 = vld [vmem:[#allocation2 + $0x30] sm:$0xff]
    %v33 = vld [vmem:[#allocation2 + $0x38] sm:$0xff]
    %v34 = vld [vmem:[#allocation2 + $0x40] sm:$0xff]
    %v35 = vld [vmem:[#allocation2 + $0x48] sm:$0xff]
    %v36 = vld [vmem:[#allocation2 + $0x50] sm:$0xff]
    %v37 = vld [vmem:[#allocation2 + $0x58] sm:$0xff]
    %v38 = vld [vmem:[#allocation2 + $0x60] sm:$0xff]
    %v39 = vld [vmem:[#allocation2 + $0x68] sm:$0xff]
    %v40 = vld [vmem:[#allocation2 + $0x70] sm:$0xff]
    %v41 = vld [vmem:[#allocation2 + $0x78] sm:$0xff]
    %v42 = vld [vmem:[#allocation2 + $0x80] sm:$0xff]
    %vm43 = vcmask 64512
    %v45 = vsel %vm43, %v25, 0
    %47 = vmatprep.subr.mxu0 0.0
    %48 = vmatpush1.msra.mxu0 %v26
    %49 = vmatprep.subr.mxu0 0.0
    %50 = vmatpush1.msra.mxu0 0.0
    %51 = vmatprep.subr.mxu0 0.0
    %52 = vmatpush1.msra.mxu0 0.0
    %53 = vmatprep.subr.mxu0 0.0
    %54 = vmatpush1.msra.mxu0 0.0
    %55 = vmatprep.subr.mxu0 0.0
    %56 = vmatpush1.msra.mxu0 0.0
    %57 = vmatprep.subr.mxu0 0.0
    %58 = vmatpush1.msra.mxu0 0.0
    %59 = vmatprep.subr.mxu0 0.0
    %60 = vmatpush1.msra.mxu0 0.0
    %61 = vmatprep.subr.mxu0 0.0
    %62 = vmatpush1.msra.mxu0 0.0
    %63 = vmatprep.subr.mxu0 0.0
    %64 = vmatpush1.msra.mxu0 0.0
    %65 = vmatprep.subr.mxu0 0.0
    %66 = vmatpush1.msra.mxu0 0.0
    %67 = vmatprep.subr.mxu0 0.0
    %68 = vmatpush1.msra.mxu0 0.0
    %69 = vmatprep.subr.mxu0 0.0
    %70 = vmatpush1.msra.mxu0 0.0
    %71 = vmatprep.subr.mxu0 0.0
    %72 = vmatpush1.msra.mxu0 0.0
    %73 = vmatprep.subr.mxu0 0.0
    %74 = vmatpush1.msra.mxu0 0.0
    %75 = vmatprep.subr.mxu0 0.0
    %76 = vmatpush1.msra.mxu0 0.0
    %77 = vmatprep.subr.mxu0 0.0
    %78 = vmatpush1.msra.mxu0 0.0
    %79 = vmatprep.subr.mxu0 0.0
    %80 = vmatpush1.msra.mxu0 0.0
    %81 = vmatprep.subr.mxu0 0.0
    %82 = vmatpush1.msra.mxu0 0.0
    %83 = vmatprep.subr.mxu0 0.0
    %84 = vmatpush1.msra.mxu0 0.0
    %85 = vmatprep.subr.mxu0 0.0
    %86 = vmatpush1.msra.mxu0 0.0
    %87 = vmatprep.subr.mxu0 0.0
    %88 = vmatpush1.msra.mxu0 0.0
    %89 = vmatprep.subr.mxu0 0.0
    %90 = vmatpush1.msra.mxu0 0.0
    %91 = vmatprep.subr.mxu0 0.0
    %92 = vmatpush1.msra.mxu0 0.0
    %93 = vmatprep.subr.mxu0 0.0
    %94 = vmatpush1.msra.mxu0 0.0
    %95 = vmatprep.subr.mxu0 0.0
    %96 = vmatpush1.msra.mxu0 0.0
    %97 = vmatprep.subr.mxu0 0.0
    %98 = vmatpush1.msra.mxu0 0.0
    %99 = vmatprep.subr.mxu0 0.0
    %100 = vmatpush1.msra.mxu0 0.0
    %101 = vmatprep.subr.mxu0 0.0
    %102 = vmatpush1.msra.mxu0 0.0
    %103 = vmatprep.subr.mxu0 0.0
    %104 = vmatpush1.msra.mxu0 0.0
    %105 = vmatprep.subr.mxu0 0.0
    %106 = vmatpush1.msra.mxu0 0.0
    %107 = vmatprep.subr.mxu0 0.0
    %108 = vmatpush1.msra.mxu0 0.0
    %109 = vmatprep.subr.mxu0 0.0
    %110 = vmatpush1.msra.mxu0 0.0
    %111 = vmatprep.mubr.f32.mxu0 0.0
    %112 = vmatmul.mubr.f32.gmra.mrb[0].mxu0 %v45
    %v113 = vpop.f32.mrb[0].mxu0
    %v114 = vadd.f32 0.0, %v113
    %v115 = vpop.f32.mrb[0].mxu0
    %116 = vdwg.mxu0
    %v117 = vmax.f32 %v114, 0.0
    %118 = vmatprep.subr.mxu0 0.0
    %119 = vmatpush1.msra.mxu0 %v27
    %120 = vmatprep.subr.mxu0 0.0
    %121 = vmatpush1.msra.mxu0 %v28
    %122 = vmatprep.subr.mxu0 0.0
    %123 = vmatpush1.msra.mxu0 %v29
    %124 = vmatprep.subr.mxu0 0.0
    %125 = vmatpush1.msra.mxu0 %v30
    %126 = vmatprep.subr.mxu0 0.0
    %127 = vmatpush1.msra.mxu0 %v31
    %128 = vmatprep.subr.mxu0 0.0
    %129 = vmatpush1.msra.mxu0 %v32
    %130 = vmatprep.subr.mxu0 0.0
    %131 = vmatpush1.msra.mxu0 %v33
    %132 = vmatprep.subr.mxu0 0.0
    %133 = vmatpush1.msra.mxu0 %v34
    %134 = vmatprep.subr.mxu0 0.0
    %135 = vmatpush1.msra.mxu0 %v35
    %136 = vmatprep.subr.mxu0 0.0
    %137 = vmatpush1.msra.mxu0 %v36
    %138 = vmatprep.subr.mxu0 0.0
    %139 = vmatpush1.msra.mxu0 %v37
    %140 = vmatprep.subr.mxu0 0.0
    %141 = vmatpush1.msra.mxu0 %v38
    %142 = vmatprep.subr.mxu0 0.0
    %143 = vmatpush1.msra.mxu0 %v39
    %144 = vmatprep.subr.mxu0 0.0
    %145 = vmatpush1.msra.mxu0 %v40
    %146 = vmatprep.subr.mxu0 0.0
    %147 = vmatpush1.msra.mxu0 %v41
    %148 = vmatprep.subr.mxu0 0.0
    %149 = vmatpush1.msra.mxu0 %v42
    %150 = vmatprep.subr.mxu0 0.0
    %151 = vmatpush1.msra.mxu0 0.0
    %152 = vmatprep.subr.mxu0 0.0
    %153 = vmatpush1.msra.mxu0 0.0
    %154 = vmatprep.subr.mxu0 0.0
    %155 = vmatpush1.msra.mxu0 0.0
    %156 = vmatprep.subr.mxu0 0.0
    %157 = vmatpush1.msra.mxu0 0.0
    %158 = vmatprep.subr.mxu0 0.0
    %159 = vmatpush1.msra.mxu0 0.0
    %160 = vmatprep.subr.mxu0 0.0
    %161 = vmatpush1.msra.mxu0 0.0
    %162 = vmatprep.subr.mxu0 0.0
    %163 = vmatpush1.msra.mxu0 0.0
    %164 = vmatprep.subr.mxu0 0.0
    %165 = vmatpush1.msra.mxu0 0.0
    %166 = vmatprep.subr.mxu0 0.0
    %167 = vmatpush1.msra.mxu0 0.0
    %168 = vmatprep.subr.mxu0 0.0
    %169 = vmatpush1.msra.mxu0 0.0
    %170 = vmatprep.subr.mxu0 0.0
    %171 = vmatpush1.msra.mxu0 0.0
    %172 = vmatprep.subr.mxu0 0.0
    %173 = vmatpush1.msra.mxu0 0.0
    %174 = vmatprep.subr.mxu0 0.0
    %175 = vmatpush1.msra.mxu0 0.0
    %176 = vmatprep.subr.mxu0 0.0
    %177 = vmatpush1.msra.mxu0 0.0
    %178 = vmatprep.subr.mxu0 0.0
    %179 = vmatpush1.msra.mxu0 0.0
    %180 = vmatprep.subr.mxu0 0.0
    %181 = vmatpush1.msra.mxu0 0.0
    %182 = vmatprep.mubr.f32.mxu0 0.0
    %183 = vmatmul.mubr.f32.gmra.mrb[0].mxu0 %v117
    %v184 = vpop.f32.mrb[0].mxu0
    %v185 = vadd.f32 0.0, %v184
    %v186 = vpop.f32.mrb[0].mxu0
    %187 = vdwg.mxu0
    %188 = vst.msk [vmem:[%s2] sm:$0xff] %vm43, %v185
    // Predicated region
    $region14: #{net_apply.1} parent=1 // pred_check
      _
    $region15: #{net_apply.1} parent=1 // pred_check_branch
      %190 = sbr.rel (0) target = $region17
    $region16: #{net_apply.1} parent=1 // pred_region
      _
    $region17: #{net_apply.1} parent=1 // pred_fallthru
      _
    // Predicated region
    $region18: #{net_apply.1} parent=1 // pred_check
      _
    $region19: #{net_apply.1} parent=1 // pred_check_branch
      %192 = sbr.rel (0) target = $region21
    $region20: #{net_apply.1} parent=1 // pred_region
      _
    $region21: #{net_apply.1} parent=1 // pred_fallthru
      _
    %193 = vsyncpa [#allocation3], 1

</llo_original>
